<compile_context>
chip_gen: v7x
topology: tpu7x:2x2x1
jax: 0.10.0
libtpu: 0.0.40
codegen_flags: <defaults>
</compile_context>

<pallas_src>
import math

import jax
import jax.numpy as jnp
from jax.experimental import pallas as pl
from jax.experimental.pallas import tpu as pltpu


def _precomputed_norm_kernel(stats_ref, x_ref, o_ref):
    # stats_ref lives in SMEM: [mean, std]. Pure streaming elementwise op;
    # compute in f32 so low-precision inputs don't lose accuracy, cast on store.
    mean = stats_ref[0]
    std = stats_ref[1]
    x = x_ref[...].astype(jnp.float32)
    o_ref[...] = ((x - mean) / std).astype(o_ref.dtype)


def precomputed_norm(x: jax.Array, mean, std) -> jax.Array:
    """Applies (x - mean) / std with a tiled, pipelined Pallas TPU kernel."""
    orig_shape = x.shape
    dtype = x.dtype

    # ---- layout-preserving 3-D view: merge only the leading dims ----------
    if x.ndim >= 3:
        lead = math.prod(orig_shape[:-2])
        x3 = x.reshape(lead, orig_shape[-2], orig_shape[-1])
    elif x.ndim == 2:
        x3 = x.reshape(1, orig_shape[0], orig_shape[1])
    else:  # 0-D / 1-D edge case
        x3 = x.reshape(1, 1, -1)
    rows, H, W = x3.shape

    itemsize = jnp.dtype(dtype).itemsize
    pack = {4: 8, 2: 16, 1: 32}.get(itemsize, 8)   # sublane packing per dtype
    target_tile_bytes = 8 * 1024 * 1024            # ~8 MiB per buffer

    # ---- lane (last) dim: full extent, or multiples of 128 when huge ------
    if W <= 128 or W * itemsize * pack <= target_tile_bytes:
        bw = W
    else:
        bw = (target_tile_bytes // (pack * itemsize)) // 128 * 128
        bw = max(128, min(bw, (W // 128) * 128))

    # ---- sublane + leading dims: fill the tile budget ----------------------
    slab_bytes = bw * itemsize                     # one (1, 1, bw) row
    rows_budget = max(1, target_tile_bytes // slab_bytes)
    if rows_budget >= H:
        bh = H                                     # full second-minor dim
        bm = max(1, min(rows, rows_budget // H))
    else:
        bh = min(H, max(pack, (rows_budget // pack) * pack))
        bm = 1

    # ---- make sure v7x's two TensorCores both get work ---------------------
    if bm >= rows and rows >= 2 and pl.cdiv(H, bh) == 1 and pl.cdiv(W, bw) == 1:
        bm = pl.cdiv(rows, 2)

    grid = (pl.cdiv(rows, bm), pl.cdiv(H, bh), pl.cdiv(W, bw))

    # 2 buffers each for input and output (double buffering) + slack.
    tile_bytes = bm * bh * bw * itemsize
    vmem_limit = int(
        min(100 * 1024 * 1024,
            max(16 * 1024 * 1024, 4 * tile_bytes + 4 * 1024 * 1024)))

    stats = jnp.stack(
        [jnp.asarray(mean, jnp.float32), jnp.asarray(std, jnp.float32)])

    out3 = pl.pallas_call(
        _precomputed_norm_kernel,
        out_shape=jax.ShapeDtypeStruct((rows, H, W), dtype),
        grid_spec=pltpu.PrefetchScalarGridSpec(
            num_scalar_prefetch=1,
            grid=grid,
            in_specs=[pl.BlockSpec((bm, bh, bw), lambda i, j, k, _: (i, j, k))],
            out_specs=pl.BlockSpec((bm, bh, bw), lambda i, j, k, _: (i, j, k)),
        ),
        compiler_params=pltpu.CompilerParams(
            dimension_semantics=("parallel", "parallel", "parallel"),
            vmem_limit_bytes=vmem_limit,
        ),
    )(stats, x3)

    return out3.reshape(orig_shape)


if __name__ == "__main__":
    key = jax.random.PRNGKey(0)
    # Small spectrogram-like batch: (batch=2, channels=4, H=16, W=16), NCHW.
    x = jax.random.normal(key, (2, 4, 16, 16), dtype=jnp.float32) * 3.0 + 1.5

    mean, std = 1.5, 3.0  # precomputed (mean, std) stats, deterministic

    y = precomputed_norm(x, mean, std)
    y = jax.block_until_ready(y)

    y_ref = (x - mean) / std
    assert y.shape == x.shape and y.dtype == x.dtype
    assert jnp.allclose(y, y_ref, atol=1e-5, rtol=1e-5), "mismatch vs reference"

    print("KERNEL_OK")
</pallas_src>

<mosaic_0001>
module attributes {stable_mosaic.version = 11 : i64} {
  func.func @_precomputed_norm_kernel(%arg0: i32, %arg1: i32, %arg2: i32, %arg3: memref<2xf32, #tpu.memory_space<smem>>, %arg4: memref<4x16x16xf32, #tpu.memory_space<vmem>>, %arg5: memref<4x16x16xf32, #tpu.memory_space<vmem>>) attributes {dimension_semantics = [#tpu.dimension_semantics<parallel>, #tpu.dimension_semantics<parallel>, #tpu.dimension_semantics<parallel>], iteration_bounds = array<i64: 2, 1, 1>, scalar_prefetch = 1 : i64, scratch_operands = 0 : i64, tpu.core_type = #tpu.core_type<tc>, window_params = [{transform_indices = @transform_0, window_bounds = array<i64: 4, 16, 16>}, {transform_indices = @transform_1, window_bounds = array<i64: 4, 16, 16>}]} {
    %c0 = arith.constant 0 : index
    %0 = memref.load %arg3[%c0] : memref<2xf32, #tpu.memory_space<smem>>
    %c1 = arith.constant 1 : index
    %1 = memref.load %arg3[%c1] : memref<2xf32, #tpu.memory_space<smem>>
    %c0_0 = arith.constant 0 : index
    %c0_1 = arith.constant 0 : index
    %c0_2 = arith.constant 0 : index
    %2 = vector.load %arg4[%c0_0, %c0_1, %c0_2] : memref<4x16x16xf32, #tpu.memory_space<vmem>>, vector<4x16x16xf32>
    %3 = vector.broadcast %0 : f32 to vector<4x16x16xf32>
    %4 = arith.subf %2, %3 : vector<4x16x16xf32>
    %5 = vector.broadcast %1 : f32 to vector<4x16x16xf32>
    %6 = arith.divf %4, %5 : vector<4x16x16xf32>
    %c0_3 = arith.constant 0 : index
    %c0_4 = arith.constant 0 : index
    %c0_5 = arith.constant 0 : index
    %7 = vector.load %arg5[%c0_3, %c0_4, %c0_5] : memref<4x16x16xf32, #tpu.memory_space<vmem>>, vector<4x16x16xf32>
    tpu.vector_store %arg5[%c0_3, %c0_4, %c0_5], %6 {strides = array<i32>} : memref<4x16x16xf32, #tpu.memory_space<vmem>>, vector<4x16x16xf32>,
    return
  }
  func.func @transform_0(%arg0: i32, %arg1: i32, %arg2: i32, %arg3: memref<2xf32, #tpu.memory_space<smem>>) -> (i32, i32, i32) {
    %c0_i32 = arith.constant 0 : i32
    return %arg0, %arg1, %arg2 : i32, i32, i32
  }
  func.func @transform_1(%arg0: i32, %arg1: i32, %arg2: i32, %arg3: memref<2xf32, #tpu.memory_space<smem>>) -> (i32, i32, i32) {
    %c0_i32 = arith.constant 0 : i32
    return %arg0, %arg1, %arg2 : i32, i32, i32
  }
}

</mosaic_0001>

<llo_original>
// kernel: tpu_custom_call.1
$region0: #{tpu_custom_call.1}
  #allocation0 [shape = 'u32[]', space=smem, size = 0x4, offset = 0x4, fixed_abs, tag = 'smem constant byte address 0x4 - core index']
  #allocation1 [shape = 'u32[144,128]{1,0:T(1,128)}', space=vmem, size = 0x12000, scoped, tag = 'internal scratch']
  #allocation2 [shape = 's32[1]{0}', space=sflag, size = 0x4, scoped, tag = 'scoped memory for tpu_custom_call.1']
  #allocation3 [shape = 'u8[512]{0}', space=smem, size = 0x200, scoped, tag = 'prefetched SMEM operand 0']
  %s0 = inlined_call_operand.hbm [shape: f32[2], index: 0, kind: input, shape index: {}]
  %s1 = inlined_call_operand.hbm [shape: f32[8,16,16], index: 1, kind: input, shape index: {}]
  %s2 = inlined_call_operand.hbm [shape: f32[8,16,16], index: 2, kind: output, shape index: {}]
  %s3 = sld [smem:[#allocation0]]
  $region41: #{tpu_custom_call.1} parent=0
    _
  %s5 = ssub.s32 1, %s3
  %s6 = scalar_select 0, %s5, %s3
  %8 = dma.hbm_to_smem %s0, 16, [#allocation3], [#allocation2]
  %9 = dma.done [#allocation2], 16
  %10 = sfence
  $region1: #{tpu_custom_call.1} parent=0
    #allocation4 [shape = 'u8[65536]{0}', space=vmem, size = 0x10000, scoped, tag = 'input window, operand 1']
    #allocation5 [shape = 's32[2]{0}', space=sflag, size = 0x8, scoped, tag = 'scoped memory for tpu_custom_call.1']
    #allocation6 [shape = 's32[2]{0}', space=sflag, size = 0x8, scoped, tag = 'scoped memory for tpu_custom_call.1']
    #allocation7 [shape = 'u8[65536]{0}', space=vmem, size = 0x10000, scoped, tag = 'output window, operand 0']
    %11 = vsyncpa [#allocation5], 0
    %s12 = scalar_lea.sflag [#allocation5], 1
    %13 = vsyncpa %s12, 0
    %14 = vsyncpa [#allocation6], 0
    %s15 = scalar_lea.sflag [#allocation6], 1
    %16 = vsyncpa %s15, 0
    loop: start=0, step=1, limit=4
    $region2: #{tpu_custom_call.1} parent=1 // loop_pre_header
      _
    $region3: #{tpu_custom_call.1} parent=1 // loop_header
      %s18 = sphi 0, %s22
      %p19 = scmp.ge.s32.totalorder %s18, 4
      %s25 = sphi 0, %s44
      %s26 = sphi 0, %s40
      %s27 = sphi 0, %s36
      %s28 = sphi 0, %s25
      %s29 = sphi 0, %s26
      %s30 = sphi 0, %s27
      %s31 = sphi 0, %s28
      %s32 = sphi 0, %s29
      %s33 = sphi 0, %s30
      %s51 = sphi 0, %s53
      %s54 = sphi 0, %s51
      %s55 = sphi 0, %s54
      %s71 = sphi 0, %s55
      %s81 = sphi 0, %s83
      %s84 = sphi 0, %s81
      %s85 = sphi 0, %s84
      %s101 = sphi 0, %s85
    $region4: #{tpu_custom_call.1} parent=1 // loop_header_branch
      %21 = sbr.rel (%p19) target = $region8
    $region5: #{tpu_custom_call.1} parent=1 // loop_body
      %s23 = ssub.s32 %s18, 1
      %s24 = ssub.s32 %s18, 2
      %s34 = sadd.s32 1, %s27
      %p35 = scmp.ge.s32.totalorder %s34, 1
      %s36 = scalar_select %p35, 0, %s34
      %s37 = sadd.s32 1, %s26
      %s38 = scalar_select %p35, %s37, %s26
      %p39 = scmp.ge.s32.totalorder %s38, 1
      %s40 = scalar_select %p39, 0, %s38
      %s41 = sadd.s32 1, %s25
      %s42 = scalar_select %p39, %s41, %s25
      %p43 = scmp.ge.s32.totalorder %s42, 2
      %s44 = scalar_select %p43, 0, %s42
      %s45 = ssub.s32 %s25, %s44
      %s46 = ssub.s32 %s26, %s40
      %s47 = sor.u32 %s45, %s46
      %s48 = ssub.s32 %s27, %s36
      %s49 = sor.u32 %s47, %s48
      %p50 = scmp.eq.s32.totalorder %s49, 0
      %s52 = sadd.s32 %s51, 1
      %s53 = scalar_select %p50, %s51, %s52
      %p56 = pneg %p50
      %p57 = scmp.eq.s32.totalorder %s18, 1
      %p58 = por %p56, %p57
      %p59 = scmp.ne.s32.totalorder %s51, %s54
      %p60 = scmp.eq.s32.totalorder %s18, 0
      %p61 = por %p59, %p60
      %p62 = scmp.ne.s32.totalorder %s51, %s54
      %p63 = scmp.eq.s32.totalorder %s23, 1
      %p64 = por %p62, %p63
      %p65 = scmp.ne.s32.totalorder %s54, %s55
      %p66 = scmp.eq.s32.totalorder %s23, 0
      %p67 = por %p65, %p66
      %p68 = scmp.ne.s32.totalorder %s54, %s55
      %p69 = scmp.eq.s32.totalorder %s24, 1
      %p70 = por %p68, %p69
      %p72 = scmp.ne.s32.totalorder %s55, %s71
      %p73 = scmp.eq.s32.totalorder %s24, 0
      %p74 = por %p72, %p73
      %s75 = ssub.s32 %s25, %s44
      %s76 = ssub.s32 %s26, %s40
      %s77 = sor.u32 %s75, %s76
      %s78 = ssub.s32 %s27, %s36
      %s79 = sor.u32 %s77, %s78
      %p80 = scmp.eq.s32.totalorder %s79, 0
      %s82 = sadd.s32 %s81, 1
      %s83 = scalar_select %p80, %s81, %s82
      %p86 = pneg %p80
      %p87 = scmp.eq.s32.totalorder %s18, 1
      %p88 = por %p86, %p87
      %p89 = scmp.ne.s32.totalorder %s81, %s84
      %p90 = scmp.eq.s32.totalorder %s18, 0
      %p91 = por %p89, %p90
      %p92 = scmp.ne.s32.totalorder %s81, %s84
      %p93 = scmp.eq.s32.totalorder %s23, 1
      %p94 = por %p92, %p93
      %p95 = scmp.ne.s32.totalorder %s84, %s85
      %p96 = scmp.eq.s32.totalorder %s23, 0
      %p97 = por %p95, %p96
      %p98 = scmp.ne.s32.totalorder %s84, %s85
      %p99 = scmp.eq.s32.totalorder %s24, 1
      %p100 = por %p98, %p99
      %p102 = scmp.ne.s32.totalorder %s85, %s101
      %p103 = scmp.eq.s32.totalorder %s24, 0
      %p104 = por %p102, %p103
      %p105 = scmp.le.s32.totalorder 1, %s18
      %p106 = scmp.lt.s32.totalorder %s18, 3
      %p107 = pnand %p105, %p106
      %p108 = pneg %p107
      // Predicated region
      $region9: #{tpu_custom_call.1} parent=5 // pred_check
        _
      $region10: #{tpu_custom_call.1} parent=5 // pred_check_branch
        %110 = sbr.rel (%p107) target = $region12
      $region11: #{tpu_custom_call.1} parent=5 // pred_region
        %s111 = ssub.s32 %s18, 1
      $region12: #{tpu_custom_call.1} parent=5 // pred_fallthru
        _
      %p112 = scmp.lt.s32.totalorder %s18, 2
      // Predicated region
      $region13: #{tpu_custom_call.1} parent=5 // pred_check
        %p113 = pneg %p112
      $region14: #{tpu_custom_call.1} parent=5 // pred_check_branch
        %115 = sbr.rel (%p113) target = $region16
      $region15: #{tpu_custom_call.1} parent=5 // pred_region
        // Predicated region
        $region17: #{tpu_custom_call.1} parent=15 // pred_check
          %p116 = pneg %p61
        $region18: #{tpu_custom_call.1} parent=15 // pred_check_branch
          %118 = sbr.rel (%p116) target = $region20
        $region19: #{tpu_custom_call.1} parent=15 // pred_region
          %s119 = sand.u32 %s51, 1
          %s120 = scalar_lea.sflag [#allocation5], %s119
          %s121 = sand.u32 %s51, 1
          %s122 = smul.addr %s121, 64
          %s123 = scalar_lea.vmem [#allocation4], %s122
          %s124 = smul.u32 4, %s25
          %s125 = smul.u32 2, %s26
          %s127 = ssub.s32 1024, 1024
          %128 = vsyncadd %s120, %s127
          %s129 = sadd.s32 %s27, %s125
          %s130 = smul.addr %s124, 2
          %s131 = sadd.s32 %s129, %s130
          %s132 = smul.addr %s131, 128
          %s133 = scalar_lea.hbm %s1, %s132
          %s134 = sshll.u32 %s123, 4
          %s135 = int_to_ptr.vmem [resolvable:$true] %s134
          %140 = dma.hbm_to_vmem [thread:$0]  %s133, 1024, %s135, %s120, 128, 128, 8
        $region20: #{tpu_custom_call.1} parent=15 // pred_fallthru
          _
      $region16: #{tpu_custom_call.1} parent=5 // pred_fallthru
        _
      %p141 = scmp.le.s32.totalorder 1, %s18
      %p142 = scmp.lt.s32.totalorder %s18, 3
      %p143 = pnand %p141, %p142
      %p144 = pneg %p143
      // Predicated region
      $region21: #{tpu_custom_call.1} parent=5 // pred_check
        _
      $region22: #{tpu_custom_call.1} parent=5 // pred_check_branch
        %146 = sbr.rel (%p143) target = $region24
      $region23: #{tpu_custom_call.1} parent=5 // pred_region
        %s147 = ssub.s32 %s18, 1
        %s148 = sand.u32 %s54, 1
        %s149 = scalar_lea.sflag [#allocation5], %s148
        %s150 = sand.u32 %s54, 1
        %s151 = smul.addr %s150, 64
        %s152 = scalar_lea.vmem [#allocation4], %s151
        // Predicated region
        $region25: #{tpu_custom_call.1} parent=23 // pred_check
          %p153 = pneg %p67
        $region26: #{tpu_custom_call.1} parent=23 // pred_check_branch
          %155 = sbr.rel (%p153) target = $region28
        $region27: #{tpu_custom_call.1} parent=23 // pred_region
          %156 = dma.done %s149, 1024
        $region28: #{tpu_custom_call.1} parent=23 // pred_fallthru
          _
        %s157 = sand.u32 %s54, 1
        %s158 = scalar_lea.sflag [#allocation5], %s157
        %s159 = sand.u32 %s54, 1
        %s160 = smul.addr %s159, 64
        %s161 = scalar_lea.vmem [#allocation4], %s160
        %p162 = pneg %p67
        %p163 = pneg %p64
        %p164 = pneg %p97
        %p165 = pneg %p94
        %s166 = sand.u32 %s84, 1
        %s167 = scalar_lea.sflag [#allocation6], %s166
        %s168 = sand.u32 %s84, 1
        %s169 = smul.addr %s168, 64
        %s170 = scalar_lea.vmem [#allocation7], %s169
        %s171 = smul.u32 4, %s28
        %s172 = smul.u32 2, %s29
        %s173 = smul.u32 4, %s28
        %s174 = smul.u32 2, %s29
        %s175 = sld [smem:[#allocation3]]
        %s176 = sld [smem:[#allocation3 + $0x1]]
        %v177 = vld [vmem:[%s152] sm:$0xff]
        %v178 = vld [vmem:[%s152 + $0x8] sm:$0xff]
        %v179 = vld [vmem:[%s152 + $0x10] sm:$0xff]
        %v180 = vld [vmem:[%s152 + $0x18] sm:$0xff]
        %v181 = vld [vmem:[%s152 + $0x20] sm:$0xff]
        %v182 = vld [vmem:[%s152 + $0x28] sm:$0xff]
        %v183 = vld [vmem:[%s152 + $0x30] sm:$0xff]
        %v184 = vld [vmem:[%s152 + $0x38] sm:$0xff]
        %v185 = vstv %s175
        %v186 = vsub.f32 %v177, %v185
        %v187 = vsub.f32 %v178, %v185
        %v188 = vsub.f32 %v179, %v185
        %v189 = vsub.f32 %v180, %v185
        %v190 = vsub.f32 %v181, %v185
        %v191 = vsub.f32 %v182, %v185
        %v192 = vsub.f32 %v183, %v185
        %v193 = vsub.f32 %v184, %v185
        %v194 = vstv %s176
        %v195 = vrcp.pop %v194
        %v196 = vmul.f32 %v186, %v195
        %v197 = vmul.f32 %v187, %v195
        %v198 = vmul.f32 %v188, %v195
        %v199 = vmul.f32 %v189, %v195
        %v200 = vmul.f32 %v190, %v195
        %v201 = vmul.f32 %v191, %v195
        %v202 = vmul.f32 %v192, %v195
        %v203 = vmul.f32 %v193, %v195
        %vm204 = vcmask 130048
        %205 = vst.msk [vmem:[%s170] sm:$0xff] %vm204, %v196
        %206 = vst.msk [vmem:[%s170 + $0x8] sm:$0xff] %vm204, %v197
        %207 = vst.msk [vmem:[%s170 + $0x10] sm:$0xff] %vm204, %v198
        %208 = vst.msk [vmem:[%s170 + $0x18] sm:$0xff] %vm204, %v199
        %209 = vst.msk [vmem:[%s170 + $0x20] sm:$0xff] %vm204, %v200
        %210 = vst.msk [vmem:[%s170 + $0x28] sm:$0xff] %vm204, %v201
        %211 = vst.msk [vmem:[%s170 + $0x30] sm:$0xff] %vm204, %v202
        %212 = vst.msk [vmem:[%s170 + $0x38] sm:$0xff] %vm204, %v203
        %s213 = sand.u32 %s84, 1
        %s214 = scalar_lea.sflag [#allocation6], %s213
        %s215 = sand.u32 %s84, 1
        %s216 = smul.addr %s215, 64
        %s217 = scalar_lea.vmem [#allocation7], %s216
        // Predicated region
        $region29: #{tpu_custom_call.1} parent=23 // pred_check
          %p218 = pneg %p94
        $region30: #{tpu_custom_call.1} parent=23 // pred_check_branch
          %220 = sbr.rel (%p218) target = $region32
        $region31: #{tpu_custom_call.1} parent=23 // pred_region
          %s221 = smul.u32 4, %s28
          %s222 = smul.u32 2, %s29
          %s224 = ssub.s32 1024, 1024
          %225 = vsyncadd %s214, %s224
          %s226 = sadd.s32 %s30, %s222
          %s227 = smul.addr %s221, 2
          %s228 = sadd.s32 %s226, %s227
          %s229 = smul.addr %s228, 128
          %s230 = scalar_lea.hbm %s2, %s229
          %s231 = sshll.u32 %s217, 4
          %s232 = int_to_ptr.vmem [resolvable:$true] %s231
          %237 = dma.vmem_to_hbm [thread:$0]  %s232, 1024, %s230, %s214, 128, 128, 8
        $region32: #{tpu_custom_call.1} parent=23 // pred_fallthru
          _
      $region24: #{tpu_custom_call.1} parent=5 // pred_fallthru
        _
      %p238 = scmp.le.s32.totalorder 2, %s18
      // Predicated region
      $region33: #{tpu_custom_call.1} parent=5 // pred_check
        %p239 = pneg %p238
      $region34: #{tpu_custom_call.1} parent=5 // pred_check_branch
        %241 = sbr.rel (%p239) target = $region36
      $region35: #{tpu_custom_call.1} parent=5 // pred_region
        %s242 = ssub.s32 %s18, 2
        // Predicated region
        $region37: #{tpu_custom_call.1} parent=35 // pred_check
          %p243 = pneg %p100
        $region38: #{tpu_custom_call.1} parent=35 // pred_check_branch
          %245 = sbr.rel (%p243) target = $region40
        $region39: #{tpu_custom_call.1} parent=35 // pred_region
          %s246 = sand.u32 %s85, 1
          %s247 = scalar_lea.sflag [#allocation6], %s246
          %s248 = sand.u32 %s85, 1
          %s249 = smul.addr %s248, 64
          %s250 = scalar_lea.vmem [#allocation7], %s249
          %251 = dma.done %s247, 1024
        $region40: #{tpu_custom_call.1} parent=35 // pred_fallthru
          _
      $region36: #{tpu_custom_call.1} parent=5 // pred_fallthru
        _
    $region6: #{tpu_custom_call.1} parent=1 // loop_footer
      %s22 = sadd.s32 1, %s18
    $region7: #{tpu_custom_call.1} parent=1 // loop_footer_branch
      %17 = sbr.rel target = $region3
    $region8: #{tpu_custom_call.1} parent=1 // loop_exit
      _
    %252 = vsyncpa [#allocation5], 1
    %s253 = scalar_lea.sflag [#allocation5], 1
    %254 = vsyncpa %s253, 1
    %255 = vsyncpa [#allocation6], 1
    %s256 = scalar_lea.sflag [#allocation6], 1
    %257 = vsyncpa %s256, 1

</llo_original>
